<compile_context>
chip_gen: v6e
topology: v6e:2x2x1
jax: 0.10.0
libtpu: 0.0.40
codegen_flags: <defaults>
</compile_context>

<pallas_src>
import numpy as np
from itertools import permutations

import jax
import jax.numpy as jnp
from jax.experimental import pallas as pl
from jax.experimental.pallas import tpu as pltpu

ALPHA = 0.8
BETA = 0.2
DICE_EPS = 1e-4
IGNORE_LABEL = 16

_TBN_MAX = 256
_THW_MAX = 4096
_PAD_NEG = -30000.0                 # finite in bf16; tanh-form sigmoid -> exactly 0
_TGT_RESIDENT_BYTES = 8 << 20       # keep the whole masks^T RHS in VMEM if <= this
_VMEM_WORKSET_BUDGET = 36 << 20     # working-set target (safe on v7x 64 MiB VMEM)
_VMEM_LIMIT_CAP = 48 << 20          # scoped-VMEM limit handed to Mosaic


def _round_up(x, m):
    return ((x + m - 1) // m) * m


def _pick_tile(total, cap, multiple):
    """Largest divisor of `total` that is a multiple of `multiple` and <= cap."""
    best = multiple
    d = multiple
    limit = min(cap, total)
    while d <= limit:
        if total % d == 0:
            best = d
        d += multiple
    return best


def _vmem_estimate(tbn, thw, HWp, Mpad, tgt_resident):
    pred = 2 * tbn * thw * 2                                    # bf16, double buffered
    interm = tbn * thw * 10                                     # f32 sigmoid + bf16 copy
    tgt = 2 * HWp * Mpad * 2 if tgt_resident else 2 * thw * Mpad * 2
    small = 2 * 2 * tbn * Mpad * 4 + 2 * 8 * Mpad * 4 + tbn * 128 * 4
    return pred + interm + tgt + small


def _make_kernel(thw, tgt_resident):
    def kernel(pred_ref, tgt_ref, logit_ref, tsum_ref, c_ref, ssq_acc):
        k = pl.program_id(1)

        @pl.when(k == 0)
        def _init():
            c_ref[...] = jnp.zeros_like(c_ref)
            ssq_acc[...] = jnp.zeros_like(ssq_acc)

        # pred streamed as bf16; upcast in-vreg, sigmoid as a single EUP tanh op
        x = pred_ref[...].astype(jnp.float32)                   # (tbn, thw)
        s = 0.5 * jnp.tanh(0.5 * x) + 0.5                       # == sigmoid(x)

        if tgt_resident:
            off = pl.multiple_of(k * thw, 128)
            tgt = tgt_ref[pl.ds(off, thw), :]                   # (thw, Mpad) slice
        else:
            tgt = tgt_ref[...]                                  # (thw, Mpad) block

        # dice numerator accumulated directly into the resident output block
        c_ref[...] += jnp.dot(s.astype(jnp.bfloat16), tgt,
                              preferred_element_type=jnp.float32)
        ssq_acc[...] += jnp.sum(s * s, axis=-1, keepdims=True)  # (tbn, 1)

        @pl.when(k == pl.num_programs(1) - 1)
        def _finalize():
            tsum = tsum_ref[...]                                # (1, Mpad)
            valid = tsum > 0.0                                  # pad columns
            denom = ssq_acc[...] + tsum + DICE_EPS
            dice = (2.0 * c_ref[...]) * pl.reciprocal(denom, approx=True)
            dice = jnp.where(valid, dice, 1.0)                  # keep log finite on pads
            prob = jax.nn.sigmoid(logit_ref[...])
            # dice**alpha * prob**beta via exp/log on the EUP
            comb = jnp.exp(ALPHA * jnp.log(dice) + BETA * jnp.log(prob))
            c_ref[...] = jnp.where(valid, comb, 0.0).astype(c_ref.dtype)

    return kernel


def inst_match_cost(pred_in, tgt_t, logit_pad, tsum_pad, *, tbn, thw,
                    tgt_resident, vmem_limit):
    """Pallas call computing the padded (BNp, Mpad) matching-cost matrix."""
    BNp, HWp = pred_in.shape
    Mpad = tgt_t.shape[1]
    grid = (BNp // tbn, HWp // thw)

    if tgt_resident:
        tgt_spec = pl.BlockSpec((HWp, Mpad), lambda i, k: (0, 0))   # DMA'd once
        tgt_bytes = HWp * Mpad * 2
    else:
        tgt_spec = pl.BlockSpec((thw, Mpad), lambda i, k: (k, 0))   # re-streamed/pass
        tgt_bytes = grid[0] * HWp * Mpad * 2

    flops = 2 * BNp * HWp * Mpad
    transc = BNp * HWp + 5 * BNp * Mpad
    bytes_acc = BNp * HWp * 2 + tgt_bytes + 2 * BNp * Mpad * 4 + Mpad * 4

    return pl.pallas_call(
        _make_kernel(thw, tgt_resident),
        out_shape=jax.ShapeDtypeStruct((BNp, Mpad), jnp.float32),
        grid_spec=pltpu.PrefetchScalarGridSpec(
            num_scalar_prefetch=0,
            grid=grid,
            in_specs=[
                pl.BlockSpec((tbn, thw), lambda i, k: (i, k)),   # pred mask logits bf16
                tgt_spec,                                        # tgt masks^T bf16
                pl.BlockSpec((tbn, Mpad), lambda i, k: (i, 0)),  # gathered class logits
                pl.BlockSpec((1, Mpad), lambda i, k: (0, 0)),    # per-target pixel counts
            ],
            out_specs=pl.BlockSpec((tbn, Mpad), lambda i, k: (i, 0)),
            scratch_shapes=[pltpu.VMEM((tbn, 1), jnp.float32)],  # sum(sigmoid(pred)^2)
        ),
        compiler_params=pltpu.CompilerParams(
            dimension_semantics=("parallel", "arbitrary"),
            vmem_limit_bytes=int(vmem_limit)),
        cost_estimate=pl.CostEstimate(
            flops=int(flops), transcendentals=int(transc),
            bytes_accessed=int(bytes_acc)),
    )(pred_in, tgt_t, logit_pad, tsum_pad)


def _reference_cost(pred_masks_flat, tgt_masks, tgt_logits):
    s = jax.nn.sigmoid(pred_masks_flat)
    num = 2.0 * s @ tgt_masks.T
    denom = (s * s).sum(-1)[:, None] + (tgt_masks * tgt_masks).sum(-1)
    dice = num / (denom + DICE_EPS)
    prob = jax.nn.sigmoid(tgt_logits)
    return dice ** ALPHA * prob ** BETA


def _lsa_maximize(c):
    """Hungarian matching (maximize). scipy if available, brute force otherwise."""
    # TODO(synk): linear_sum_assignment has no Pallas equivalent; runs on host
    # (mirrors the reference's `.cpu()` before scipy matching).
    try:
        from scipy.optimize import linear_sum_assignment
        return linear_sum_assignment(c, maximize=True)
    except Exception:
        n, m = c.shape
        assert m <= n, "fallback matcher expects #targets <= #queries"
        best_score, best_rows = -np.inf, None
        for rows in permutations(range(n), m):
            sc = sum(c[r, j] for j, r in enumerate(rows))
            if sc > best_score:
                best_score, best_rows = sc, rows
        row = np.asarray(best_rows)
        col = np.arange(m)
        order = np.argsort(row)
        return row[order], col[order]


def inst_matcher_forward(pred_masks, pred_logits, targets, *, check_numerics=False):
    """JAX/Pallas equivalent of InstMatcher.forward.

    pred_masks : (B, N, H*W) float mask logits
    pred_logits: (B, N, num_classes) float class logits
    targets    : (B, H, W) int label map (label 16 is ignored)
    returns (indices, tgt_masks) like the PyTorch module.
    """
    B, N, HW = pred_masks.shape
    BN = B * N

    # ---- host-side target extraction (data-dependent shapes) ----
    # TODO(synk): unique-label extraction (dynamic #targets) has no Pallas equivalent.
    targets_np = np.asarray(targets)
    tgt_ids, tgt_mask_list, sizes = [], [], []
    for b in range(targets_np.shape[0]):
        tgt = targets_np[b].reshape(-1)
        labels = [int(l) for l in sorted(np.unique(tgt).tolist()) if l != IGNORE_LABEL]
        sizes.append(len(labels))
        for lbl in labels:
            tgt_ids.append(lbl)
            tgt_mask_list.append((tgt == lbl).astype(np.float32))
    M = len(tgt_ids)
    if M == 0:
        # reference would crash here (torch.cat of empty list); return empty match
        empty = [(np.zeros(0, np.int64), np.zeros(0, np.int64)) for _ in range(B)]
        return empty, jnp.zeros((0, HW), jnp.float32)

    tgt_ids = np.asarray(tgt_ids, dtype=np.int32)
    tgt_masks_np = np.stack(tgt_mask_list, 0)                           # (M, HW)
    tgt_masks = jnp.asarray(tgt_masks_np, dtype=jnp.float32)

    # ---- padded / tiled layouts for the kernel ----
    Mpad = max(128, _round_up(M, 128))     # lane-dense output; stays 128 when M<=128
    BNp = _round_up(BN, 8)
    tbn = _pick_tile(BNp, _TBN_MAX, 8)
    if BNp // tbn == 1 and BNp % 16 == 0:  # give megacore (v7x) at least 2 BN tiles
        tbn = BNp // 2
    HWp = _round_up(HW, 128)
    tgt_resident = 2 * HWp * Mpad * 2 <= _TGT_RESIDENT_BYTES

    thw_cap = _THW_MAX
    while True:
        thw = _pick_tile(HWp, thw_cap, 128)
        est = _vmem_estimate(tbn, thw, HWp, Mpad, tgt_resident)
        if est <= _VMEM_WORKSET_BUDGET or thw <= 512:
            break
        thw_cap = max(512, thw // 2)
    vmem_limit = min(_VMEM_LIMIT_CAP, max(24 << 20, est + (8 << 20)))

    # pred streamed as bf16; pad only when ragged, fused with the cast (no f32 pad copy)
    pred_flat = pred_masks.reshape(BN, HW)
    pred_in = pred_flat.astype(jnp.bfloat16)
    if BNp != BN or HWp != HW:
        pred_in = jnp.pad(pred_in, ((0, BNp - BN), (0, HWp - HW)),
                          constant_values=_PAD_NEG)

    tgt_t_np = np.zeros((HWp, Mpad), dtype=np.float32)
    tgt_t_np[:HW, :M] = tgt_masks_np.T
    tgt_t = jnp.asarray(tgt_t_np, dtype=jnp.bfloat16)                   # exact 0/1

    tsum_np = np.zeros((1, Mpad), dtype=np.float32)
    tsum_np[0, :M] = tgt_masks_np.sum(-1)      # == sum(t*t) since masks are binary
    tsum_pad = jnp.asarray(tsum_np)

    # gather class logits at tgt_ids (sigmoid commutes with the gather; applied
    # inside the kernel's finalize block)
    tgt_logits = pred_logits.reshape(BN, -1)[:, tgt_ids].astype(jnp.float32)
    logit_pad = jnp.zeros((BNp, Mpad), dtype=jnp.float32)
    logit_pad = logit_pad.at[:BN, :M].set(tgt_logits)

    # ---- Pallas hot path ----
    C_pad = inst_match_cost(pred_in, tgt_t, logit_pad, tsum_pad,
                            tbn=tbn, thw=thw, tgt_resident=tgt_resident,
                            vmem_limit=vmem_limit)
    C = C_pad[:BN, :M]

    if check_numerics:  # debug only: forces a host sync + full XLA recompute
        C_ref = _reference_cost(pred_flat.astype(jnp.float32), tgt_masks, tgt_logits)
        np.testing.assert_allclose(np.asarray(C), np.asarray(C_ref),
                                   rtol=5e-2, atol=5e-3)

    # ---- host-side Hungarian matching per batch (as in the reference) ----
    C_np = np.asarray(C).reshape(B, N, M)
    indices, off = [], 0
    for b, sz in enumerate(sizes):
        if sz == 0:
            indices.append((np.zeros(0, np.int64), np.zeros(0, np.int64)))
            continue
        c_b = C_np[b, :, off:off + sz]
        i, j = _lsa_maximize(c_b)
        indices.append((np.asarray(i, dtype=np.int64), np.asarray(j, dtype=np.int64)))
        off += sz
    return indices, tgt_masks


if __name__ == "__main__":
    B, N, H, W = 2, 8, 16, 16
    num_classes = 17      # labels 0..16, 16 == ignore
    HW = H * W

    key = jax.random.PRNGKey(0)
    k1, k2 = jax.random.split(key)
    pred_masks = jax.random.normal(k1, (B, N, HW), dtype=jnp.float32)
    pred_logits = jax.random.normal(k2, (B, N, num_classes), dtype=jnp.float32)

    # deterministic synthetic label maps (label 16 = background/ignore)
    targets = np.full((B, H, W), IGNORE_LABEL, dtype=np.int32)
    targets[0, :8, :8] = 0
    targets[0, 8:, 8:] = 3
    targets[1, :5, :] = 1
    targets[1, 6:10, :] = 2
    targets[1, 12:, :4] = 5

    indices, tgt_masks = inst_matcher_forward(pred_masks, pred_logits, targets,
                                              check_numerics=True)
    jax.block_until_ready(tgt_masks)

    assert len(indices) == B
    assert tgt_masks.shape == (5, HW)
    print("KERNEL_OK")
</pallas_src>

<mosaic_0001>
module attributes {stable_mosaic.version = 11 : i64} {
  func.func @kernel(%arg0: i32, %arg1: i32, %arg2: memref<8x256xbf16, #tpu.memory_space<vmem>>, %arg3: memref<256x128xbf16, #tpu.memory_space<vmem>>, %arg4: memref<8x128xf32, #tpu.memory_space<vmem>>, %arg5: memref<1x128xf32, #tpu.memory_space<vmem>>, %arg6: memref<8x128xf32, #tpu.memory_space<vmem>>, %arg7: memref<8x1xf32, #tpu.memory_space<vmem>>) attributes {dimension_semantics = [#tpu.dimension_semantics<parallel>, #tpu.dimension_semantics<arbitrary>], iteration_bounds = array<i64: 2, 1>, scalar_prefetch = 0 : i64, scratch_operands = 1 : i64, tpu.core_type = #tpu.core_type<tc>, window_params = [{transform_indices = @transform_0, window_bounds = array<i64: 8, 256>}, {pipeline_mode = #tpu.pipeline_mode<synchronous>, transform_indices = @transform_1, window_bounds = array<i64: 256, 128>}, {transform_indices = @transform_2, window_bounds = array<i64: 8, 128>}, {pipeline_mode = #tpu.pipeline_mode<synchronous>, transform_indices = @transform_3, window_bounds = array<i64: 1, 128>}, {transform_indices = @transform_4, window_bounds = array<i64: 8, 128>}]} {
    %c0_i32 = arith.constant 0 : i32
    %0 = arith.cmpi eq, %arg1, %c0_i32 : i32
    %1 = arith.extui %0 : i1 to i32
    %c0_i32_0 = arith.constant 0 : i32
    %2 = arith.cmpi ne, %1, %c0_i32_0 : i32
    scf.if %2 {
      %cst_17 = arith.constant 0.000000e+00 : f32
      %30 = vector.broadcast %cst_17 : f32 to vector<8x128xf32>
      %c0_18 = arith.constant 0 : index
      %c0_19 = arith.constant 0 : index
      %31 = vector.load %arg6[%c0_18, %c0_19] : memref<8x128xf32, #tpu.memory_space<vmem>>, vector<8x128xf32>
      tpu.vector_store %arg6[%c0_18, %c0_19], %30 {strides = array<i32>} : memref<8x128xf32, #tpu.memory_space<vmem>>, vector<8x128xf32>,
      %cst_20 = arith.constant 0.000000e+00 : f32
      %32 = vector.broadcast %cst_20 : f32 to vector<8x1xf32>
      %c0_21 = arith.constant 0 : index
      %c0_22 = arith.constant 0 : index
      %33 = vector.load %arg7[%c0_21, %c0_22] : memref<8x1xf32, #tpu.memory_space<vmem>>, vector<8x1xf32>
      tpu.vector_store %arg7[%c0_21, %c0_22], %32 {strides = array<i32>} : memref<8x1xf32, #tpu.memory_space<vmem>>, vector<8x1xf32>,
    } else {
    }
    %c0 = arith.constant 0 : index
    %c0_1 = arith.constant 0 : index
    %3 = vector.load %arg2[%c0, %c0_1] : memref<8x256xbf16, #tpu.memory_space<vmem>>, vector<8x256xbf16>
    %4 = arith.extf %3 : vector<8x256xbf16> to vector<8x256xf32>
    %cst = arith.constant 5.000000e-01 : f32
    %5 = vector.broadcast %cst : f32 to vector<8x256xf32>
    %6 = arith.mulf %5, %4 : vector<8x256xf32>
    %7 = math.tanh %6 : vector<8x256xf32>
    %cst_2 = arith.constant 5.000000e-01 : f32
    %8 = vector.broadcast %cst_2 : f32 to vector<8x256xf32>
    %9 = arith.mulf %8, %7 : vector<8x256xf32>
    %cst_3 = arith.constant 5.000000e-01 : f32
    %10 = vector.broadcast %cst_3 : f32 to vector<8x256xf32>
    %11 = arith.addf %9, %10 : vector<8x256xf32>
    %c256_i32 = arith.constant 256 : i32
    %12 = arith.muli %arg1, %c256_i32 : i32
    %13 = tpu.assume_multiple %12, 128 : i32
    %14 = arith.index_cast %13 : i32 to index
    %c0_4 = arith.constant 0 : index
    %15 = vector.load %arg3[%14, %c0_4] : memref<256x128xbf16, #tpu.memory_space<vmem>>, vector<256x128xbf16>
    %c0_5 = arith.constant 0 : index
    %c0_6 = arith.constant 0 : index
    %16 = vector.load %arg6[%c0_5, %c0_6] : memref<8x128xf32, #tpu.memory_space<vmem>>, vector<8x128xf32>
    %17 = arith.truncf %11 : vector<8x256xf32> to vector<8x256xbf16>
    %cst_7 = arith.constant dense<0.000000e+00> : vector<8x128xf32>
    %18 = tpu.matmul %17, %15, %cst_7 {dimension_numbers = #tpu.dot_dimension_numbers<[1], [0], [0], [1], [0, 0, 1, 1], [], []>} : vector<8x256xbf16>, vector<256x128xbf16>, vector<8x128xf32> -> vector<8x128xf32>
    %19 = arith.addf %16, %18 : vector<8x128xf32>
    %c0_8 = arith.constant 0 : index
    %c0_9 = arith.constant 0 : index
    %20 = vector.load %arg6[%c0_8, %c0_9] : memref<8x128xf32, #tpu.memory_space<vmem>>, vector<8x128xf32>
    tpu.vector_store %arg6[%c0_8, %c0_9], %19 {strides = array<i32>} : memref<8x128xf32, #tpu.memory_space<vmem>>, vector<8x128xf32>,
    %c0_10 = arith.constant 0 : index
    %c0_11 = arith.constant 0 : index
    %21 = vector.load %arg7[%c0_10, %c0_11] : memref<8x1xf32, #tpu.memory_space<vmem>>, vector<8x1xf32>
    %22 = arith.mulf %11, %11 : vector<8x256xf32>
    %cst_12 = arith.constant dense<0.000000e+00> : vector<8xf32>
    %23 = vector.multi_reduction <add>, %22, %cst_12 [1] : vector<8x256xf32> to vector<8xf32>
    %24 = vector.shape_cast %23 : vector<8xf32> to vector<8x1xf32>
    %25 = arith.addf %21, %24 : vector<8x1xf32>
    %c0_13 = arith.constant 0 : index
    %c0_14 = arith.constant 0 : index
    %26 = vector.load %arg7[%c0_13, %c0_14] : memref<8x1xf32, #tpu.memory_space<vmem>>, vector<8x1xf32>
    tpu.vector_store %arg7[%c0_13, %c0_14], %25 {strides = array<i32>} : memref<8x1xf32, #tpu.memory_space<vmem>>, vector<8x1xf32>,
    %c0_i32_15 = arith.constant 0 : i32
    %27 = arith.cmpi eq, %arg1, %c0_i32_15 : i32
    %28 = arith.extui %27 : i1 to i32
    %c0_i32_16 = arith.constant 0 : i32
    %29 = arith.cmpi ne, %28, %c0_i32_16 : i32
    scf.if %29 {
      %c0_17 = arith.constant 0 : index
      %c0_18 = arith.constant 0 : index
      %30 = vector.load %arg5[%c0_17, %c0_18] : memref<1x128xf32, #tpu.memory_space<vmem>>, vector<1x128xf32>
      %cst_19 = arith.constant 0.000000e+00 : f32
      %31 = vector.broadcast %cst_19 : f32 to vector<1x128xf32>
      %32 = arith.cmpf ogt, %30, %31 : vector<1x128xf32>
      %c0_20 = arith.constant 0 : index
      %c0_21 = arith.constant 0 : index
      %33 = vector.load %arg7[%c0_20, %c0_21] : memref<8x1xf32, #tpu.memory_space<vmem>>, vector<8x1xf32>
      %34 = vector.broadcast %33 : vector<8x1xf32> to vector<8x128xf32>
      %35 = vector.broadcast %30 : vector<1x128xf32> to vector<8x128xf32>
      %36 = arith.addf %34, %35 : vector<8x128xf32>
      %cst_22 = arith.constant 9.99999974E-5 : f32
      %37 = vector.broadcast %cst_22 : f32 to vector<8x128xf32>
      %38 = arith.addf %36, %37 : vector<8x128xf32>
      %c0_23 = arith.constant 0 : index
      %c0_24 = arith.constant 0 : index
      %39 = vector.load %arg6[%c0_23, %c0_24] : memref<8x128xf32, #tpu.memory_space<vmem>>, vector<8x128xf32>
      %cst_25 = arith.constant 2.000000e+00 : f32
      %40 = vector.broadcast %cst_25 : f32 to vector<8x128xf32>
      %41 = arith.mulf %40, %39 : vector<8x128xf32>
      %42 = tpu.reciprocal %38 {approx = true} : vector<8x128xf32> -> vector<8x128xf32>
      %43 = arith.mulf %41, %42 : vector<8x128xf32>
      %cst_26 = arith.constant 1.000000e+00 : f32
      %44 = vector.shape_cast %32 : vector<1x128xi1> to vector<1x128xi1>
      %45 = vector.broadcast %44 : vector<1x128xi1> to vector<8x128xi1>
      %46 = vector.broadcast %cst_26 : f32 to vector<8x128xf32>
      %47 = arith.select %45, %43, %46 : vector<8x128xi1>, vector<8x128xf32>
      %c0_27 = arith.constant 0 : index
      %c0_28 = arith.constant 0 : index
      %48 = vector.load %arg4[%c0_27, %c0_28] : memref<8x128xf32, #tpu.memory_space<vmem>>, vector<8x128xf32>
      %49 = arith.negf %48 : vector<8x128xf32>
      %50 = math.exp %49 : vector<8x128xf32>
      %cst_29 = arith.constant 1.000000e+00 : f32
      %51 = vector.broadcast %cst_29 : f32 to vector<8x128xf32>
      %52 = arith.addf %51, %50 : vector<8x128xf32>
      %53 = arith.divf %51, %52 : vector<8x128xf32>
      %54 = math.log %47 : vector<8x128xf32>
      %cst_30 = arith.constant 8.000000e-01 : f32
      %55 = vector.broadcast %cst_30 : f32 to vector<8x128xf32>
      %56 = arith.mulf %55, %54 : vector<8x128xf32>
      %57 = math.log %53 : vector<8x128xf32>
      %cst_31 = arith.constant 2.000000e-01 : f32
      %58 = vector.broadcast %cst_31 : f32 to vector<8x128xf32>
      %59 = arith.mulf %58, %57 : vector<8x128xf32>
      %60 = arith.addf %56, %59 : vector<8x128xf32>
      %61 = math.exp %60 : vector<8x128xf32>
      %cst_32 = arith.constant 0.000000e+00 : f32
      %62 = vector.shape_cast %32 : vector<1x128xi1> to vector<1x128xi1>
      %63 = vector.broadcast %62 : vector<1x128xi1> to vector<8x128xi1>
      %64 = vector.broadcast %cst_32 : f32 to vector<8x128xf32>
      %65 = arith.select %63, %61, %64 : vector<8x128xi1>, vector<8x128xf32>
      %c0_33 = arith.constant 0 : index
      %c0_34 = arith.constant 0 : index
      %66 = vector.load %arg6[%c0_33, %c0_34] : memref<8x128xf32, #tpu.memory_space<vmem>>, vector<8x128xf32>
      tpu.vector_store %arg6[%c0_33, %c0_34], %65 {strides = array<i32>} : memref<8x128xf32, #tpu.memory_space<vmem>>, vector<8x128xf32>,
    } else {
    }
    return
  }
  func.func @transform_0(%arg0: i32, %arg1: i32) -> (i32, i32) {
    %c0_i32 = arith.constant 0 : i32
    return %arg0, %arg1 : i32, i32
  }
  func.func @transform_1(%arg0: i32, %arg1: i32) -> (i32, i32) {
    %c0_i32 = arith.constant 0 : i32
    %c0_i32_0 = arith.constant 0 : i32
    %c0_i32_1 = arith.constant 0 : i32
    return %c0_i32, %c0_i32_0 : i32, i32
  }
  func.func @transform_2(%arg0: i32, %arg1: i32) -> (i32, i32) {
    %c0_i32 = arith.constant 0 : i32
    %c0_i32_0 = arith.constant 0 : i32
    return %arg0, %c0_i32 : i32, i32
  }
  func.func @transform_3(%arg0: i32, %arg1: i32) -> (i32, i32) {
    %c0_i32 = arith.constant 0 : i32
    %c0_i32_0 = arith.constant 0 : i32
    %c0_i32_1 = arith.constant 0 : i32
    return %c0_i32, %c0_i32_0 : i32, i32
  }
  func.func @transform_4(%arg0: i32, %arg1: i32) -> (i32, i32) {
    %c0_i32 = arith.constant 0 : i32
    %c0_i32_0 = arith.constant 0 : i32
    return %arg0, %c0_i32 : i32, i32
  }
}

</mosaic_0001>

<llo_original>
// kernel: tpu_custom_call.1
$region0: #{tpu_custom_call.1}
  #allocation0 [shape = 'u32[]', space=smem, size = 0x4, offset = 0x4, fixed_abs, tag = 'smem constant byte address 0x4 - core index']
  #allocation1 [shape = 'u32[144,128]{1,0:T(1,128)}', space=vmem, size = 0x12000, scoped, tag = 'internal scratch']
  #allocation2 [shape = 'f32[8,1]{1,0:T(8,128)}', space=vmem, size = 0x1000, scoped, tag = 'scratch operand']
  %s0 = inlined_call_operand.hbm [shape: bf16[16,256], index: 0, kind: input, shape index: {}]
  %s1 = inlined_call_operand.hbm [shape: bf16[256,128], index: 1, kind: input, shape index: {}]
  %s2 = inlined_call_operand.hbm [shape: f32[16,128], index: 2, kind: input, shape index: {}]
  %s3 = inlined_call_operand.vmem [shape: f32[1,128], index: 3, kind: input, shape index: {}]
  %s4 = inlined_call_operand.hbm [shape: f32[16,128], index: 4, kind: output, shape index: {}]
  %s5 = sld [smem:[#allocation0]]
  $region69: #{tpu_custom_call.1} parent=0
    _
  %s7 = ssub.s32 1, %s5
  %s8 = scalar_select 0, %s7, %s5
  $region1: #{tpu_custom_call.1} parent=0
    #allocation3 [shape = 'u8[8192]{0}', space=vmem, size = 0x2000, scoped, tag = 'input window, operand 0']
    #allocation4 [shape = 's32[2]{0}', space=sflag, size = 0x8, scoped, tag = 'scoped memory for tpu_custom_call.1']
    #allocation5 [shape = 's32[2]{0}', space=sflag, size = 0x8, scoped, tag = 'scoped memory for tpu_custom_call.1']
    #allocation6 [shape = 'u8[65536]{0}', space=vmem, size = 0x10000, scoped, tag = 'input window, operand 1, single buffered']
    #allocation7 [shape = 's32[1]{0}', space=sflag, size = 0x4, scoped, tag = 'scoped memory for tpu_custom_call.1']
    #allocation8 [shape = 'u8[8192]{0}', space=vmem, size = 0x2000, scoped, tag = 'input window, operand 2']
    #allocation9 [shape = 'u8[8192]{0}', space=vmem, size = 0x2000, scoped, tag = 'output window, operand 0']
    %9 = vsyncpa [#allocation4], 0
    %s10 = scalar_lea.sflag [#allocation4], 1
    %11 = vsyncpa %s10, 0
    %12 = vsyncpa [#allocation7], 0
    %13 = vsyncpa [#allocation5], 0
    %s14 = scalar_lea.sflag [#allocation5], 1
    %15 = vsyncpa %s14, 0
    loop: start=0, step=1, limit=4
    $region2: #{tpu_custom_call.1} parent=1 // loop_pre_header
      _
    $region3: #{tpu_custom_call.1} parent=1 // loop_header
      %s17 = sphi 0, %s21
      %p18 = scmp.ge.s32.totalorder %s17, 4
      %s24 = sphi 0, %s36
      %s25 = sphi 0, %s32
      %s26 = sphi 0, %s24
      %s27 = sphi 0, %s25
      %s28 = sphi 0, %s26
      %s29 = sphi 0, %s27
      %s41 = sphi 0, %s43
      %s44 = sphi 0, %s41
      %s45 = sphi 0, %s44
      %s61 = sphi 0, %s45
      %s65 = sphi 0, %s65
      %s67 = sphi 0, %s65
      %s68 = sphi 0, %s67
      %s82 = sphi 0, %s68
      %s88 = sphi 0, %s90
      %s91 = sphi 0, %s88
      %s92 = sphi 0, %s91
      %s108 = sphi 0, %s92
      %s112 = sphi 0, %s112
      %s114 = sphi 0, %s112
      %s115 = sphi 0, %s114
      %s129 = sphi 0, %s115
      %s135 = sphi 0, %s137
      %s138 = sphi 0, %s135
      %s139 = sphi 0, %s138
      %s155 = sphi 0, %s139
    $region4: #{tpu_custom_call.1} parent=1 // loop_header_branch
      %20 = sbr.rel (%p18) target = $region8
    $region5: #{tpu_custom_call.1} parent=1 // loop_body
      %s22 = ssub.s32 %s17, 1
      %s23 = ssub.s32 %s17, 2
      %s30 = sadd.s32 1, %s25
      %p31 = scmp.ge.s32.totalorder %s30, 1
      %s32 = scalar_select %p31, 0, %s30
      %s33 = sadd.s32 1, %s24
      %s34 = scalar_select %p31, %s33, %s24
      %p35 = scmp.ge.s32.totalorder %s34, 2
      %s36 = scalar_select %p35, 0, %s34
      %s37 = ssub.s32 %s24, %s36
      %s38 = ssub.s32 %s25, %s32
      %s39 = sor.u32 %s37, %s38
      %p40 = scmp.eq.s32.totalorder %s39, 0
      %s42 = sadd.s32 %s41, 1
      %s43 = scalar_select %p40, %s41, %s42
      %p46 = pneg %p40
      %p47 = scmp.eq.s32.totalorder %s17, 1
      %p48 = por %p46, %p47
      %p49 = scmp.ne.s32.totalorder %s41, %s44
      %p50 = scmp.eq.s32.totalorder %s17, 0
      %p51 = por %p49, %p50
      %p52 = scmp.ne.s32.totalorder %s41, %s44
      %p53 = scmp.eq.s32.totalorder %s22, 1
      %p54 = por %p52, %p53
      %p55 = scmp.ne.s32.totalorder %s44, %s45
      %p56 = scmp.eq.s32.totalorder %s22, 0
      %p57 = por %p55, %p56
      %p58 = scmp.ne.s32.totalorder %s44, %s45
      %p59 = scmp.eq.s32.totalorder %s23, 1
      %p60 = por %p58, %p59
      %p62 = scmp.ne.s32.totalorder %s45, %s61
      %p63 = scmp.eq.s32.totalorder %s23, 0
      %p64 = por %p62, %p63
      %s66 = sadd.s32 %s65, 1
      %p69 = scmp.eq.s32.totalorder %s17, 1
      %p70 = scmp.ne.s32.totalorder %s65, %s67
      %p71 = scmp.eq.s32.totalorder %s17, 0
      %p72 = por %p70, %p71
      %p73 = scmp.ne.s32.totalorder %s65, %s67
      %p74 = scmp.eq.s32.totalorder %s22, 1
      %p75 = por %p73, %p74
      %p76 = scmp.ne.s32.totalorder %s67, %s68
      %p77 = scmp.eq.s32.totalorder %s22, 0
      %p78 = por %p76, %p77
      %p79 = scmp.ne.s32.totalorder %s67, %s68
      %p80 = scmp.eq.s32.totalorder %s23, 1
      %p81 = por %p79, %p80
      %p83 = scmp.ne.s32.totalorder %s68, %s82
      %p84 = scmp.eq.s32.totalorder %s23, 0
      %p85 = por %p83, %p84
      %s86 = ssub.s32 %s24, %s36
      %p87 = scmp.eq.s32.totalorder %s86, 0
      %s89 = sadd.s32 %s88, 1
      %s90 = scalar_select %p87, %s88, %s89
      %p93 = pneg %p87
      %p94 = scmp.eq.s32.totalorder %s17, 1
      %p95 = por %p93, %p94
      %p96 = scmp.ne.s32.totalorder %s88, %s91
      %p97 = scmp.eq.s32.totalorder %s17, 0
      %p98 = por %p96, %p97
      %p99 = scmp.ne.s32.totalorder %s88, %s91
      %p100 = scmp.eq.s32.totalorder %s22, 1
      %p101 = por %p99, %p100
      %p102 = scmp.ne.s32.totalorder %s91, %s92
      %p103 = scmp.eq.s32.totalorder %s22, 0
      %p104 = por %p102, %p103
      %p105 = scmp.ne.s32.totalorder %s91, %s92
      %p106 = scmp.eq.s32.totalorder %s23, 1
      %p107 = por %p105, %p106
      %p109 = scmp.ne.s32.totalorder %s92, %s108
      %p110 = scmp.eq.s32.totalorder %s23, 0
      %p111 = por %p109, %p110
      %s113 = sadd.s32 %s112, 1
      %p116 = scmp.eq.s32.totalorder %s17, 1
      %p117 = scmp.ne.s32.totalorder %s112, %s114
      %p118 = scmp.eq.s32.totalorder %s17, 0
      %p119 = por %p117, %p118
      %p120 = scmp.ne.s32.totalorder %s112, %s114
      %p121 = scmp.eq.s32.totalorder %s22, 1
      %p122 = por %p120, %p121
      %p123 = scmp.ne.s32.totalorder %s114, %s115
      %p124 = scmp.eq.s32.totalorder %s22, 0
      %p125 = por %p123, %p124
      %p126 = scmp.ne.s32.totalorder %s114, %s115
      %p127 = scmp.eq.s32.totalorder %s23, 1
      %p128 = por %p126, %p127
      %p130 = scmp.ne.s32.totalorder %s115, %s129
      %p131 = scmp.eq.s32.totalorder %s23, 0
      %p132 = por %p130, %p131
      %s133 = ssub.s32 %s24, %s36
      %p134 = scmp.eq.s32.totalorder %s133, 0
      %s136 = sadd.s32 %s135, 1
      %s137 = scalar_select %p134, %s135, %s136
      %p140 = pneg %p134
      %p141 = scmp.eq.s32.totalorder %s17, 1
      %p142 = por %p140, %p141
      %p143 = scmp.ne.s32.totalorder %s135, %s138
      %p144 = scmp.eq.s32.totalorder %s17, 0
      %p145 = por %p143, %p144
      %p146 = scmp.ne.s32.totalorder %s135, %s138
      %p147 = scmp.eq.s32.totalorder %s22, 1
      %p148 = por %p146, %p147
      %p149 = scmp.ne.s32.totalorder %s138, %s139
      %p150 = scmp.eq.s32.totalorder %s22, 0
      %p151 = por %p149, %p150
      %p152 = scmp.ne.s32.totalorder %s138, %s139
      %p153 = scmp.eq.s32.totalorder %s23, 1
      %p154 = por %p152, %p153
      %p156 = scmp.ne.s32.totalorder %s139, %s155
      %p157 = scmp.eq.s32.totalorder %s23, 0
      %p158 = por %p156, %p157
      %p159 = scmp.le.s32.totalorder 1, %s17
      %p160 = scmp.lt.s32.totalorder %s17, 3
      %p161 = pnand %p159, %p160
      %p162 = pneg %p161
      // Predicated region
      $region9: #{tpu_custom_call.1} parent=5 // pred_check
        _
      $region10: #{tpu_custom_call.1} parent=5 // pred_check_branch
        %164 = sbr.rel (%p161) target = $region12
      $region11: #{tpu_custom_call.1} parent=5 // pred_region
        %s165 = ssub.s32 %s17, 1
        // Predicated region
        $region13: #{tpu_custom_call.1} parent=11 // pred_check
          %p166 = pneg %p78
        $region14: #{tpu_custom_call.1} parent=11 // pred_check_branch
          %168 = sbr.rel (%p166) target = $region16
        $region15: #{tpu_custom_call.1} parent=11 // pred_region
          %s170 = ssub.s32 2048, 2048
          %171 = vsyncadd [#allocation7], %s170
          %s172 = sshll.u32 [#allocation6], 4
          %s173 = int_to_ptr.vmem [resolvable:$true] %s172
          %178 = dma.hbm_to_vmem [thread:$0]  %s1, 2048, %s173, [#allocation7], 64, 64, 4
        $region16: #{tpu_custom_call.1} parent=11 // pred_fallthru
          _
        // Predicated region
        $region17: #{tpu_custom_call.1} parent=11 // pred_check
          %p179 = pneg %p125
        $region18: #{tpu_custom_call.1} parent=11 // pred_check_branch
          %181 = sbr.rel (%p179) target = $region20
        $region19: #{tpu_custom_call.1} parent=11 // pred_region
          _
        $region20: #{tpu_custom_call.1} parent=11 // pred_fallthru
          _
      $region12: #{tpu_custom_call.1} parent=5 // pred_fallthru
        _
      %p182 = scmp.lt.s32.totalorder %s17, 2
      // Predicated region
      $region21: #{tpu_custom_call.1} parent=5 // pred_check
        %p183 = pneg %p182
      $region22: #{tpu_custom_call.1} parent=5 // pred_check_branch
        %185 = sbr.rel (%p183) target = $region24
      $region23: #{tpu_custom_call.1} parent=5 // pred_region
        // Predicated region
        $region25: #{tpu_custom_call.1} parent=23 // pred_check
          %p186 = pneg %p51
        $region26: #{tpu_custom_call.1} parent=23 // pred_check_branch
          %188 = sbr.rel (%p186) target = $region28
        $region27: #{tpu_custom_call.1} parent=23 // pred_region
          %s189 = sand.u32 %s17, 1
          %s190 = scalar_lea.sflag [#allocation4], %s189
          %s191 = sand.u32 %s41, 1
          %s192 = smul.addr %s191, 8
          %s193 = scalar_lea.vmem [#allocation3], %s192
          %s194 = smul.u32 2, %s25
          %s196 = ssub.s32 128, 128
          %197 = vsyncadd %s190, %s196
          %s198 = smul.addr %s24, 2
          %s199 = sadd.s32 %s194, %s198
          %s200 = smul.addr %s199, 64
          %s201 = scalar_lea.hbm %s0, %s200
          %s203 = sshll.u32 %s193, 4
          %s204 = int_to_ptr.vmem [resolvable:$true] %s203
          %206 = dma.hbm_to_vmem [thread:$0]  %s201, 128, %s204, %s190
        $region28: #{tpu_custom_call.1} parent=23 // pred_fallthru
          _
        // Predicated region
        $region29: #{tpu_custom_call.1} parent=23 // pred_check
          %p207 = pneg %p98
        $region30: #{tpu_custom_call.1} parent=23 // pred_check_branch
          %209 = sbr.rel (%p207) target = $region32
        $region31: #{tpu_custom_call.1} parent=23 // pred_region
          %s210 = sand.u32 %s17, 1
          %s211 = scalar_lea.sflag [#allocation4], %s210
          %s212 = sand.u32 %s88, 1
          %s213 = smul.addr %s212, 8
          %s214 = scalar_lea.vmem [#allocation8], %s213
          %s216 = ssub.s32 128, 128
          %217 = vsyncadd %s211, %s216
          %s218 = smul.addr %s24, 128
          %s219 = scalar_lea.hbm %s2, %s218
          %s221 = sshll.u32 %s214, 4
          %s222 = int_to_ptr.vmem [resolvable:$true] %s221
          %224 = dma.hbm_to_vmem [thread:$0]  %s219, 128, %s222, %s211
        $region32: #{tpu_custom_call.1} parent=23 // pred_fallthru
          _
      $region24: #{tpu_custom_call.1} parent=5 // pred_fallthru
        _
      %p225 = scmp.le.s32.totalorder 1, %s17
      %p226 = scmp.lt.s32.totalorder %s17, 3
      %p227 = pnand %p225, %p226
      %p228 = pneg %p227
      // Predicated region
      $region33: #{tpu_custom_call.1} parent=5 // pred_check
        _
      $region34: #{tpu_custom_call.1} parent=5 // pred_check_branch
        %230 = sbr.rel (%p227) target = $region36
      $region35: #{tpu_custom_call.1} parent=5 // pred_region
        %s231 = ssub.s32 %s17, 1
        %s232 = sand.u32 %s22, 1
        %s233 = scalar_lea.sflag [#allocation4], %s232
        %s234 = sand.u32 %s44, 1
        %s235 = smul.addr %s234, 8
        %s236 = scalar_lea.vmem [#allocation3], %s235
        // Predicated region
        $region37: #{tpu_custom_call.1} parent=35 // pred_check
          %p237 = pneg %p57
        $region38: #{tpu_custom_call.1} parent=35 // pred_check_branch
          %239 = sbr.rel (%p237) target = $region40
        $region39: #{tpu_custom_call.1} parent=35 // pred_region
          %240 = dma.done %s233, 128
        $region40: #{tpu_custom_call.1} parent=35 // pred_fallthru
          _
        // Predicated region
        $region41: #{tpu_custom_call.1} parent=35 // pred_check
          %p241 = pneg %p78
        $region42: #{tpu_custom_call.1} parent=35 // pred_check_branch
          %243 = sbr.rel (%p241) target = $region44
        $region43: #{tpu_custom_call.1} parent=35 // pred_region
          %244 = dma.done [#allocation7], 2048
        $region44: #{tpu_custom_call.1} parent=35 // pred_fallthru
          _
        %s245 = sand.u32 %s22, 1
        %s246 = scalar_lea.sflag [#allocation4], %s245
        %s247 = sand.u32 %s91, 1
        %s248 = smul.addr %s247, 8
        %s249 = scalar_lea.vmem [#allocation8], %s248
        // Predicated region
        $region45: #{tpu_custom_call.1} parent=35 // pred_check
          %p250 = pneg %p104
        $region46: #{tpu_custom_call.1} parent=35 // pred_check_branch
          %252 = sbr.rel (%p250) target = $region48
        $region47: #{tpu_custom_call.1} parent=35 // pred_region
          %253 = dma.done %s246, 128
        $region48: #{tpu_custom_call.1} parent=35 // pred_fallthru
          _
        %s254 = sand.u32 %s22, 1
        %s255 = scalar_lea.sflag [#allocation4], %s254
        %s256 = sand.u32 %s44, 1
        %s257 = smul.addr %s256, 8
        %s258 = scalar_lea.vmem [#allocation3], %s257
        %p259 = pneg %p57
        %p260 = pneg %p54
        %p261 = pneg %p78
        %p262 = pneg %p75
        %s263 = sand.u32 %s22, 1
        %s264 = scalar_lea.sflag [#allocation4], %s263
        %s265 = sand.u32 %s91, 1
        %s266 = smul.addr %s265, 8
        %s267 = scalar_lea.vmem [#allocation8], %s266
        %p268 = pneg %p104
        %p269 = pneg %p101
        %p270 = pneg %p125
        %p271 = pneg %p122
        %p272 = pneg %p151
        %p273 = pneg %p148
        %s274 = sand.u32 %s138, 1
        %s275 = scalar_lea.sflag [#allocation5], %s274
        %s276 = sand.u32 %s138, 1
        %s277 = smul.addr %s276, 8
        %s278 = scalar_lea.vmem [#allocation9], %s277
        %s279 = smul.u32 2, %s27
        %p281 = scmp.eq.s32.totalorder %s27, 0
        // Predicated region
        $region49: #{tpu_custom_call.1} parent=35 // pred_check
          %p282 = pneg %p281
        $region50: #{tpu_custom_call.1} parent=35 // pred_check_branch
          %284 = sbr.rel (%p282) target = $region52
        $region51: #{tpu_custom_call.1} parent=35 // pred_region
          %285 = vst [vmem:[%s278] sm:$0xff] 0.0
          %vm286 = vcmask 7168
          %287 = vst.msk [vmem:[#allocation2] sm:$0xff] %vm286, 0.0
        $region52: #{tpu_custom_call.1} parent=35 // pred_fallthru
          _
        %v288 = vld [vmem:[%s236] sm:$0xff]
        %v289 = vunpack.c.l.bf16 %v288
        %v290 = vunpack.c.h.bf16 %v288
        %v291 = vmul.f32 %v289, 0.5
        %v292 = vmul.f32 %v290, 0.5
        %v293 = vtanh.pop %v291
        %v294 = vtanh.pop %v292
        %v295 = vmul.f32 %v293, 0.5
        %v296 = vmul.f32 %v294, 0.5
        %v297 = vadd.f32 %v295, 0.5
        %v298 = vadd.f32 %v296, 0.5
        %s299 = smul.u32 %s27, 256
        %s300 = sshra.s32 %s299, 3
        %s301 = sand.u32 %s299, 7
        %s302 = smul.addr %s300, 4
        %s303 = scalar_lea.vmem [#allocation6], %s302
        %v304 = vld [vmem:[%s303] sm:$0xf]
        %v305 = vld [vmem:[%s303 + $0x4] sm:$0xf]
        %v306 = vld [vmem:[%s303 + $0x8] sm:$0xf]
        %v307 = vld [vmem:[%s303 + $0xc] sm:$0xf]
        %v308 = vld [vmem:[%s303 + $0x10] sm:$0xf]
        %v309 = vld [vmem:[%s303 + $0x14] sm:$0xf]
        %v310 = vld [vmem:[%s303 + $0x18] sm:$0xf]
        %v311 = vld [vmem:[%s303 + $0x1c] sm:$0xf]
        %v312 = vld [vmem:[%s303 + $0x20] sm:$0xf]
        %v313 = vld [vmem:[%s303 + $0x24] sm:$0xf]
        %v314 = vld [vmem:[%s303 + $0x28] sm:$0xf]
        %v315 = vld [vmem:[%s303 + $0x2c] sm:$0xf]
        %v316 = vld [vmem:[%s303 + $0x30] sm:$0xf]
        %v317 = vld [vmem:[%s303 + $0x34] sm:$0xf]
        %v318 = vld [vmem:[%s303 + $0x38] sm:$0xf]
        %v319 = vld [vmem:[%s303 + $0x3c] sm:$0xf]
        %v320 = vld [vmem:[%s303 + $0x40] sm:$0xf]
        %v321 = vld [vmem:[%s303 + $0x44] sm:$0xf]
        %v322 = vld [vmem:[%s303 + $0x48] sm:$0xf]
        %v323 = vld [vmem:[%s303 + $0x4c] sm:$0xf]
        %v324 = vld [vmem:[%s303 + $0x50] sm:$0xf]
        %v325 = vld [vmem:[%s303 + $0x54] sm:$0xf]
        %v326 = vld [vmem:[%s303 + $0x58] sm:$0xf]
        %v327 = vld [vmem:[%s303 + $0x5c] sm:$0xf]
        %v328 = vld [vmem:[%s303 + $0x60] sm:$0xf]
        %v329 = vld [vmem:[%s303 + $0x64] sm:$0xf]
        %v330 = vld [vmem:[%s303 + $0x68] sm:$0xf]
        %v331 = vld [vmem:[%s303 + $0x6c] sm:$0xf]
        %v332 = vld [vmem:[%s303 + $0x70] sm:$0xf]
        %v333 = vld [vmem:[%s303 + $0x74] sm:$0xf]
        %v334 = vld [vmem:[%s303 + $0x78] sm:$0xf]
        %v335 = vld [vmem:[%s303 + $0x7c] sm:$0xf]
        %v336 = vld [vmem:[%s278] sm:$0xff]
        %v337 = vpack.c.bf16 %v297, %v297
        %v338 = vpack.c.bf16 %v298, %v298
        %v371 = vunpack.c.l.b16 %v304
        %v372 = vunpack.c.l.b16 %v305
        %v373 = vunpack.c.l.b16 %v306
        %v374 = vunpack.c.l.b16 %v307
        %v375 = vunpack.c.l.b16 %v308
        %v376 = vunpack.c.l.b16 %v309
        %v377 = vunpack.c.l.b16 %v310
        %v378 = vunpack.c.l.b16 %v311
        %v379 = vunpack.c.l.b16 %v312
        %v380 = vunpack.c.l.b16 %v313
        %v381 = vunpack.c.l.b16 %v314
        %v382 = vunpack.c.l.b16 %v315
        %v383 = vunpack.c.l.b16 %v316
        %v384 = vunpack.c.l.b16 %v317
        %v385 = vunpack.c.l.b16 %v318
        %v386 = vunpack.c.l.b16 %v319
        %v387 = vunpack.c.l.b16 %v320
        %v388 = vunpack.c.l.b16 %v321
        %v389 = vunpack.c.l.b16 %v322
        %v390 = vunpack.c.l.b16 %v323
        %v391 = vunpack.c.l.b16 %v324
        %v392 = vunpack.c.l.b16 %v325
        %v393 = vunpack.c.l.b16 %v326
        %v394 = vunpack.c.l.b16 %v327
        %v395 = vunpack.c.l.b16 %v328
        %v396 = vunpack.c.l.b16 %v329
        %v397 = vunpack.c.l.b16 %v330
        %v398 = vunpack.c.l.b16 %v331
        %v399 = vunpack.c.l.b16 %v332
        %v400 = vunpack.c.l.b16 %v333
        %v401 = vunpack.c.l.b16 %v334
        %v402 = vunpack.c.l.b16 %v335
        %v403 = vpack.c.b16 %v372, %v371
        %v404 = vpack.c.b16 %v374, %v373
        %v405 = vpack.c.b16 %v376, %v375
        %v406 = vpack.c.b16 %v378, %v377
        %v407 = vpack.c.b16 %v380, %v379
        %v408 = vpack.c.b16 %v382, %v381
        %v409 = vpack.c.b16 %v384, %v383
        %v410 = vpack.c.b16 %v386, %v385
        %v411 = vpack.c.b16 %v388, %v387
        %v412 = vpack.c.b16 %v390, %v389
        %v413 = vpack.c.b16 %v392, %v391
        %v414 = vpack.c.b16 %v394, %v393
        %v415 = vpack.c.b16 %v396, %v395
        %v416 = vpack.c.b16 %v398, %v397
        %v417 = vpack.c.b16 %v400, %v399
        %v418 = vpack.c.b16 %v402, %v401
        %435 = vmatprep.subr.bf16.mxu0 0
        %436 = vmatpush1.bf16.msra.mxu0 %v410
        %437 = vmatprep.subr.bf16.mxu0 0
        %438 = vmatpush1.bf16.msra.mxu0 %v409
        %439 = vmatprep.subr.bf16.mxu0 0
        %440 = vmatpush1.bf16.msra.mxu0 %v408
        %441 = vmatprep.subr.bf16.mxu0 0
        %442 = vmatpush1.bf16.msra.mxu0 %v407
        %443 = vmatprep.subr.bf16.mxu0 0
        %444 = vmatpush1.bf16.msra.mxu0 %v406
        %445 = vmatprep.subr.bf16.mxu0 0
        %446 = vmatpush1.bf16.msra.mxu0 %v405
        %447 = vmatprep.subr.bf16.mxu0 0
        %448 = vmatpush1.bf16.msra.mxu0 %v404
        %449 = vmatprep.subr.bf16.mxu0 0
        %450 = vmatpush1.bf16.msra.mxu0 %v403
        %451 = vmatprep.subr.bf16.mxu0 0
        %452 = vmatpush2.bf16.msra.mxu0 %v418
        %453 = vmatprep.subr.bf16.mxu0 0
        %454 = vmatpush2.bf16.msra.mxu0 %v417
        %455 = vmatprep.subr.bf16.mxu0 0
        %456 = vmatpush2.bf16.msra.mxu0 %v416
        %457 = vmatprep.subr.bf16.mxu0 0
        %458 = vmatpush2.bf16.msra.mxu0 %v415
        %459 = vmatprep.subr.bf16.mxu0 0
        %460 = vmatpush2.bf16.msra.mxu0 %v414
        %461 = vmatprep.subr.bf16.mxu0 0
        %462 = vmatpush2.bf16.msra.mxu0 %v413
        %463 = vmatprep.subr.bf16.mxu0 0
        %464 = vmatpush2.bf16.msra.mxu0 %v412
        %465 = vmatprep.subr.bf16.mxu0 0
        %466 = vmatpush2.bf16.msra.mxu0 %v411
        %467 = vmatprep.mubr.bf16.mxu0 %v338
        %468 = vmatmul.mubr.bf16.gmra.mxu0 %v337
        %v469 = vpop.f32.mrf.mxu0
        %v470 = vadd.f32 0.0, %v469
        %v471 = vpop.f32.mrf.mxu0
        %v472 = vpop.f32.mrf.mxu0
        %v473 = vpop.f32.mrf.mxu0
        %474 = vdwg.mxu0
        %v475 = vadd.f32 %v336, %v470
        %476 = vst [vmem:[%s278] sm:$0xff] %v475
        %v477 = vld [vmem:[#allocation2] sm:$0xff]
        %v478 = vmul.f32 %v297, %v297
        %v479 = vmul.f32 %v298, %v298
        %v480 = vadd.f32 %v478, %v479
        %481 = vadd.xlane.f32.xlu0 %v480
        %v482 = vpop.xlane.xlu0 %481
        %v483 = vadd.f32 %v477, %v482
        %vm484 = vcmask 7168
        %485 = vst.msk [vmem:[#allocation2] sm:$0xff] %vm484, %v483
        // Predicated region
        $region53: #{tpu_custom_call.1} parent=35 // pred_check
          %p486 = pneg %p281
        $region54: #{tpu_custom_call.1} parent=35 // pred_check_branch
          %488 = sbr.rel (%p486) target = $region56
        $region55: #{tpu_custom_call.1} parent=35 // pred_region
          %v489 = vld [vmem:[%s3] sm:$0x1]
          %vm490 = vcmp.gt.f32.partialorder %v489, 0.0
          %v491 = vld [vmem:[#allocation2] sm:$0xff]
          %493 = vset.pattern.permute.xlu0 0
          %494 = vperm.xlu0 %493, %v491
          %v495 = vpop.permute.xlu0 %494
          %v498 = vlaneseq
          %v499 = vshrl.u32 %v498, 7
          %v500 = vsub.s32 0, %v499
          %v501 = vrot.slane %v489, %v500
          %v503 = vadd.f32 %v495, %v501
          %v504 = vadd.f32 %v503, 0.0001
          %v505 = vld [vmem:[%s278] sm:$0xff]
          %v506 = vmul.f32 %v505, 2.0
          %v507 = vrcp.pop %v504
          %v508 = vmul.f32 %v506, %v507
          %v509 = vsel %vm490, 1, 0
          %v510 = vlaneseq
          %v511 = vshrl.u32 %v510, 7
          %v512 = vsub.s32 0, %v511
          %v513 = vrot.slane %v509, %v512
          %vm514 = vcmp.eq.s32.totalorder %v513, 1
          %v515 = vsel %vm514, %v508, 1.0
          %v516 = vld [vmem:[%s249] sm:$0xff]
          %v517 = vxor.u32 %v516, 2147483648
          %v518 = vmul.f32 %v517, 1.442695
          %v519 = vpow.pop %v518
          %v520 = vadd.f32 %v519, 1.0
          %v521 = vrcp.pop %v520
          %v522 = vmul.f32 1.0, %v521
          %v523 = vlog2.pop %v515
          %v524 = vmul.f32 %v523, 0.6931472
          %v525 = vmul.f32 %v524, 0.8
          %v526 = vlog2.pop %v522
          %v527 = vmul.f32 %v526, 0.6931472
          %v528 = vmul.f32 %v527, 0.2
          %v529 = vadd.f32 %v525, %v528
          %v530 = vmul.f32 %v529, 1.442695
          %v531 = vpow.pop %v530
          %v532 = vsel %vm514, %v531, 0.0
          %533 = vst [vmem:[%s278] sm:$0xff] %v532
        $region56: #{tpu_custom_call.1} parent=35 // pred_fallthru
          _
        %s534 = sand.u32 %s138, 1
        %s535 = scalar_lea.sflag [#allocation5], %s534
        %s536 = sand.u32 %s138, 1
        %s537 = smul.addr %s536, 8
        %s538 = scalar_lea.vmem [#allocation9], %s537
        // Predicated region
        $region57: #{tpu_custom_call.1} parent=35 // pred_check
          %p539 = pneg %p148
        $region58: #{tpu_custom_call.1} parent=35 // pred_check_branch
          %541 = sbr.rel (%p539) target = $region60
        $region59: #{tpu_custom_call.1} parent=35 // pred_region
          %s543 = ssub.s32 128, 128
          %544 = vsyncadd %s535, %s543
          %s545 = smul.addr %s26, 128
          %s546 = scalar_lea.hbm %s4, %s545
          %s548 = sshll.u32 %s538, 4
          %s549 = int_to_ptr.vmem [resolvable:$true] %s548
          %551 = dma.vmem_to_hbm [thread:$0]  %s549, 128, %s546, %s535
        $region60: #{tpu_custom_call.1} parent=35 // pred_fallthru
          _
      $region36: #{tpu_custom_call.1} parent=5 // pred_fallthru
        _
      %p552 = scmp.le.s32.totalorder 2, %s17
      // Predicated region
      $region61: #{tpu_custom_call.1} parent=5 // pred_check
        %p553 = pneg %p552
      $region62: #{tpu_custom_call.1} parent=5 // pred_check_branch
        %555 = sbr.rel (%p553) target = $region64
      $region63: #{tpu_custom_call.1} parent=5 // pred_region
        %s556 = ssub.s32 %s17, 2
        // Predicated region
        $region65: #{tpu_custom_call.1} parent=63 // pred_check
          %p557 = pneg %p154
        $region66: #{tpu_custom_call.1} parent=63 // pred_check_branch
          %559 = sbr.rel (%p557) target = $region68
        $region67: #{tpu_custom_call.1} parent=63 // pred_region
          %s560 = sand.u32 %s139, 1
          %s561 = scalar_lea.sflag [#allocation5], %s560
          %s562 = sand.u32 %s139, 1
          %s563 = smul.addr %s562, 8
          %s564 = scalar_lea.vmem [#allocation9], %s563
          %565 = dma.done %s561, 128
        $region68: #{tpu_custom_call.1} parent=63 // pred_fallthru
          _
      $region64: #{tpu_custom_call.1} parent=5 // pred_fallthru
        _
    $region6: #{tpu_custom_call.1} parent=1 // loop_footer
      %s21 = sadd.s32 1, %s17
    $region7: #{tpu_custom_call.1} parent=1 // loop_footer_branch
      %16 = sbr.rel target = $region3
    $region8: #{tpu_custom_call.1} parent=1 // loop_exit
      _
    %566 = vsyncpa [#allocation4], 1
    %s567 = scalar_lea.sflag [#allocation4], 1
    %568 = vsyncpa %s567, 1
    %569 = vsyncpa [#allocation7], 1
    %570 = vsyncpa [#allocation5], 1
    %s571 = scalar_lea.sflag [#allocation5], 1
    %572 = vsyncpa %s571, 1

</llo_original>
